<compile_context>
chip_gen: v7x
topology: tpu7x:2x2x1
jax: 0.10.0
libtpu: 0.0.40
codegen_flags: <defaults>
</compile_context>

<pallas_src>
import math

import jax
import jax.numpy as jnp
from jax.experimental import pallas as pl
from jax.experimental.pallas import tpu as pltpu

_TARGET_BLOCK_BYTES = 2 * 1024 * 1024  # ~2 MiB/input block: safe on v5e/v6e/v7x


def _add_kernel(x_ref, y_ref, o_ref):
    # Elementwise add on the current VMEM tile (VPU work).
    o_ref[...] = x_ref[...] + y_ref[...]


def _bias_add_kernel(x_ref, b_ref, o_ref):
    # b_ref block is (1, H); broadcasts across the sublane axis in-register.
    o_ref[...] = x_ref[...] + b_ref[...]


def _sublane_multiple(dtype):
    itemsize = jnp.dtype(dtype).itemsize
    return {4: 8, 2: 16, 1: 32}.get(itemsize, 8)


def _pick_lane(total):
    """Largest lane width (multiple of 128) that evenly divides `total`."""
    for cand in (8192, 4096, 2048, 1024, 512, 256, 128):
        if total % cand == 0:
            return cand
    return 0


def _tile_rows_for(rows, lane, dtype):
    """Pick a sublane-aligned row tile targeting ~2 MiB blocks, >=2 grid steps."""
    itemsize = jnp.dtype(dtype).itemsize
    sub = _sublane_multiple(dtype)
    tile_rows = max(sub, (_TARGET_BLOCK_BYTES // max(1, lane * itemsize)) // sub * sub)
    tile_rows = min(tile_rows, rows)
    grid_n = -(-rows // tile_rows)
    # Ensure at least 2 grid steps for megacore sharding (v7x: 2 TCs/chip)
    # whenever the array is large enough to split cleanly.
    if grid_n == 1 and rows >= 2 * sub:
        tile_rows = -(-((rows + 1) // 2) // sub) * sub
        grid_n = -(-rows // tile_rows)
    return tile_rows, grid_n


def _add_same_shape(x, y):
    """x + y for identically shaped operands, via a lane-dense flattened tiling."""
    shape = x.shape
    if len(shape) == 0:
        return x + y
    total = math.prod(shape)
    dtype = x.dtype

    lane = _pick_lane(total)
    if lane == 0:
        # Odd total (not a multiple of 128): fall back to (rows, last) layout.
        lane = shape[-1]
    rows = total // lane

    x2 = x.reshape(rows, lane)
    y2 = y.reshape(rows, lane)
    tile_rows, grid_n = _tile_rows_for(rows, lane, dtype)

    out2 = pl.pallas_call(
        _add_kernel,
        out_shape=jax.ShapeDtypeStruct((rows, lane), dtype),
        grid_spec=pltpu.PrefetchScalarGridSpec(
            num_scalar_prefetch=0,
            grid=(grid_n,),
            in_specs=[
                pl.BlockSpec((tile_rows, lane), lambda i: (i, 0)),
                pl.BlockSpec((tile_rows, lane), lambda i: (i, 0)),
            ],
            out_specs=pl.BlockSpec((tile_rows, lane), lambda i: (i, 0)),
        ),
        compiler_params=pltpu.CompilerParams(
            dimension_semantics=("parallel",),
        ),
    )(x2, y2)
    return out2.reshape(shape)


def _add_bias(x, bias_1h):
    """x + bias where x is (..., H) and bias_1h is (1, H).

    The bias stays resident in VMEM (fixed-block BlockSpec); the broadcast is
    never materialized in HBM, so HBM traffic is 1 read + 1 write of x.
    """
    shape = x.shape
    H = shape[-1]
    rows = math.prod(shape[:-1]) if len(shape) > 1 else 1
    dtype = x.dtype

    x2 = x.reshape(rows, H)
    tile_rows, grid_n = _tile_rows_for(rows, H, dtype)

    out2 = pl.pallas_call(
        _bias_add_kernel,
        out_shape=jax.ShapeDtypeStruct((rows, H), dtype),
        grid_spec=pltpu.PrefetchScalarGridSpec(
            num_scalar_prefetch=0,
            grid=(grid_n,),
            in_specs=[
                pl.BlockSpec((tile_rows, H), lambda i: (i, 0)),
                pl.BlockSpec((1, H), lambda i: (0, 0)),  # bias: fixed, resident
            ],
            out_specs=pl.BlockSpec((tile_rows, H), lambda i: (i, 0)),
        ),
        compiler_params=pltpu.CompilerParams(
            dimension_semantics=("parallel",),
        ),
    )(x2, bias_1h)
    return out2.reshape(shape)


def pallas_add(x, y, *, force_pallas=False, min_bytes=1 << 20):
    """Elementwise x + y (the `Add` module) via Pallas TPU kernels.

    - Tiny tensors bypass Pallas entirely (XLA fuses the add for free) unless
      `force_pallas=True`.
    - Same-shape operands use a lane-dense flattened tiling.
    - Bias-style broadcasts (smaller operand broadcasting over leading dims,
      e.g. y = [hidden]) are handled in-kernel without materializing the
      broadcast in HBM.
    """
    out_shape = jnp.broadcast_shapes(x.shape, y.shape)
    out_dtype = jnp.result_type(x.dtype, y.dtype)
    total = math.prod(out_shape) if out_shape else 1
    itemsize = jnp.dtype(out_dtype).itemsize

    if not force_pallas and total * itemsize < min_bytes:
        # Too small for a kernel launch to pay off; let XLA fuse it.
        return (x + y).astype(out_dtype)

    x = x.astype(out_dtype)
    y = y.astype(out_dtype)

    if len(out_shape) == 0:
        return x + y

    # Identical shapes (residual add): lane-dense flattened kernel.
    if x.shape == out_shape and y.shape == out_shape:
        return _add_same_shape(x, y)

    # Bias-style broadcast: one operand has full shape, the other broadcasts
    # only over leading dims (shape like [H], [1, H], [1, 1, H], scalar, ...).
    big, small = (x, y) if x.shape == out_shape else (
        (y, x) if y.shape == out_shape else (None, None))
    if big is not None:
        H = out_shape[-1]
        s_shape = small.shape
        lead_ok = all(d == 1 for d in s_shape[:-1]) if len(s_shape) > 1 else True
        last_ok = (len(s_shape) == 0) or s_shape[-1] in (1, H)
        if lead_ok and last_ok:
            bias_1h = jnp.broadcast_to(small.reshape(1, -1), (1, H)) \
                if small.size == H else jnp.broadcast_to(small.reshape(1, 1), (1, H))
            return _add_bias(big, bias_1h)

    # General broadcast fallback: materialize (rare path) and use the
    # same-shape kernel so the result stays correct.
    xb = jnp.broadcast_to(x, out_shape)
    yb = jnp.broadcast_to(y, out_shape)
    return _add_same_shape(xb, yb)


if __name__ == "__main__":
    key = jax.random.PRNGKey(0)
    kx, ky, kb = jax.random.split(key, 3)

    # BERT-ish small shapes: batch=2, seq=8, hidden=32.
    x = jax.random.normal(kx, (2, 8, 32), dtype=jnp.float32)
    y = jax.random.normal(ky, (2, 8, 32), dtype=jnp.float32)
    bias = jax.random.normal(kb, (32,), dtype=jnp.float32)

    # Residual add (same shapes) — lane-dense flattened kernel.
    out = pallas_add(x, y, force_pallas=True)
    jax.block_until_ready(out)
    expected = x + y
    assert out.shape == expected.shape
    assert jnp.allclose(out, expected, atol=1e-6), "residual-add mismatch vs reference"

    # Bias add (broadcast over leading dims) — in-kernel broadcast, no HBM blowup.
    out_b = pallas_add(x, bias, force_pallas=True)
    jax.block_until_ready(out_b)
    expected_b = x + bias
    assert out_b.shape == expected_b.shape
    assert jnp.allclose(out_b, expected_b, atol=1e-6), "bias-add mismatch vs reference"

    print("KERNEL_OK")
</pallas_src>

<mosaic_0001>
module attributes {stable_mosaic.version = 11 : i64} {
  func.func @_add_kernel(%arg0: i32, %arg1: memref<1x512xf32, #tpu.memory_space<vmem>>, %arg2: memref<1x512xf32, #tpu.memory_space<vmem>>, %arg3: memref<1x512xf32, #tpu.memory_space<vmem>>) attributes {dimension_semantics = [#tpu.dimension_semantics<parallel>], iteration_bounds = array<i64: 1>, scalar_prefetch = 0 : i64, scratch_operands = 0 : i64, tpu.core_type = #tpu.core_type<tc>, window_params = [{transform_indices = @transform_0, window_bounds = array<i64: 1, 512>}, {transform_indices = @transform_1, window_bounds = array<i64: 1, 512>}, {transform_indices = @transform_2, window_bounds = array<i64: 1, 512>}]} {
    %c0 = arith.constant 0 : index
    %c0_0 = arith.constant 0 : index
    %0 = vector.load %arg1[%c0, %c0_0] : memref<1x512xf32, #tpu.memory_space<vmem>>, vector<1x512xf32>
    %c0_1 = arith.constant 0 : index
    %c0_2 = arith.constant 0 : index
    %1 = vector.load %arg2[%c0_1, %c0_2] : memref<1x512xf32, #tpu.memory_space<vmem>>, vector<1x512xf32>
    %2 = arith.addf %0, %1 : vector<1x512xf32>
    %c0_3 = arith.constant 0 : index
    %c0_4 = arith.constant 0 : index
    %3 = vector.load %arg3[%c0_3, %c0_4] : memref<1x512xf32, #tpu.memory_space<vmem>>, vector<1x512xf32>
    tpu.vector_store %arg3[%c0_3, %c0_4], %2 {strides = array<i32>} : memref<1x512xf32, #tpu.memory_space<vmem>>, vector<1x512xf32>,
    return
  }
  func.func @transform_0(%arg0: i32) -> (i32, i32) {
    %c0_i32 = arith.constant 0 : i32
    %c0_i32_0 = arith.constant 0 : i32
    return %arg0, %c0_i32 : i32, i32
  }
  func.func @transform_1(%arg0: i32) -> (i32, i32) {
    %c0_i32 = arith.constant 0 : i32
    %c0_i32_0 = arith.constant 0 : i32
    return %arg0, %c0_i32 : i32, i32
  }
  func.func @transform_2(%arg0: i32) -> (i32, i32) {
    %c0_i32 = arith.constant 0 : i32
    %c0_i32_0 = arith.constant 0 : i32
    return %arg0, %c0_i32 : i32, i32
  }
}

</mosaic_0001>

<llo_original>
// kernel: tpu_custom_call.1
$region0: #{tpu_custom_call.1}
  #allocation0 [shape = 'u32[]', space=smem, size = 0x4, offset = 0x4, fixed_abs, tag = 'smem constant byte address 0x4 - core index']
  #allocation1 [shape = 'u32[144,128]{1,0:T(1,128)}', space=vmem, size = 0x12000, scoped, tag = 'internal scratch']
  %s0 = inlined_call_operand.hbm [shape: f32[1,512], index: 0, kind: input, shape index: {}]
  %s1 = inlined_call_operand.hbm [shape: f32[1,512], index: 1, kind: input, shape index: {}]
  %s2 = inlined_call_operand.hbm [shape: f32[1,512], index: 2, kind: output, shape index: {}]
  %s3 = sld [smem:[#allocation0]]
  $region26: #{tpu_custom_call.1} parent=0
    _
  %s5 = ssub.s32 1, %s3
  %s6 = scalar_select 0, %s5, %s3
  $region1: #{tpu_custom_call.1} parent=0
    #allocation2 [shape = 'u8[2048]{0}', space=vmem, size = 0x800, scoped, tag = 'input window, operand 0, single buffered']
    #allocation3 [shape = 's32[1]{0}', space=sflag, size = 0x4, scoped, tag = 'scoped memory for tpu_custom_call.1']
    #allocation4 [shape = 's32[1]{0}', space=sflag, size = 0x4, scoped, tag = 'scoped memory for tpu_custom_call.1']
    #allocation5 [shape = 'u8[2048]{0}', space=vmem, size = 0x800, scoped, tag = 'input window, operand 1, single buffered']
    #allocation6 [shape = 's32[1]{0}', space=sflag, size = 0x4, scoped, tag = 'scoped memory for tpu_custom_call.1']
    #allocation7 [shape = 'u8[2048]{0}', space=vmem, size = 0x800, scoped, tag = 'output window, operand 0, single buffered']
    %7 = vsyncpa [#allocation3], 0
    %8 = vsyncpa [#allocation6], 0
    %9 = vsyncpa [#allocation4], 0
    // Predicated region
    $region2: #{tpu_custom_call.1} parent=1 // pred_check
      _
    $region3: #{tpu_custom_call.1} parent=1 // pred_check_branch
      %11 = sbr.rel (0) target = $region5
    $region4: #{tpu_custom_call.1} parent=1 // pred_region
      %s13 = ssub.s32 64, 64
      %14 = vsyncadd [#allocation3], %s13
      %s16 = sshll.u32 [#allocation2], 4
      %s17 = int_to_ptr.vmem [resolvable:$true] %s16
      %19 = dma.hbm_to_vmem [thread:$0]  %s0, 64, %s17, [#allocation3]
    $region5: #{tpu_custom_call.1} parent=1 // pred_fallthru
      _
    // Predicated region
    $region6: #{tpu_custom_call.1} parent=1 // pred_check
      _
    $region7: #{tpu_custom_call.1} parent=1 // pred_check_branch
      %21 = sbr.rel (0) target = $region9
    $region8: #{tpu_custom_call.1} parent=1 // pred_region
      %s23 = ssub.s32 64, 64
      %24 = vsyncadd [#allocation6], %s23
      %s26 = sshll.u32 [#allocation5], 4
      %s27 = int_to_ptr.vmem [resolvable:$true] %s26
      %29 = dma.hbm_to_vmem [thread:$0]  %s1, 64, %s27, [#allocation6]
    $region9: #{tpu_custom_call.1} parent=1 // pred_fallthru
      _
    // Predicated region
    $region10: #{tpu_custom_call.1} parent=1 // pred_check
      _
    $region11: #{tpu_custom_call.1} parent=1 // pred_check_branch
      %31 = sbr.rel (0) target = $region13
    $region12: #{tpu_custom_call.1} parent=1 // pred_region
      %32 = dma.done [#allocation3], 64
    $region13: #{tpu_custom_call.1} parent=1 // pred_fallthru
      _
    // Predicated region
    $region14: #{tpu_custom_call.1} parent=1 // pred_check
      _
    $region15: #{tpu_custom_call.1} parent=1 // pred_check_branch
      %34 = sbr.rel (0) target = $region17
    $region16: #{tpu_custom_call.1} parent=1 // pred_region
      %35 = dma.done [#allocation6], 64
    $region17: #{tpu_custom_call.1} parent=1 // pred_fallthru
      _
    %v36 = vld [vmem:[#allocation2] sm:$0xf]
    %v37 = vld [vmem:[#allocation5] sm:$0xf]
    %v38 = vadd.f32 %v36, %v37
    %v39 = vlaneseq
    %vm40 = vcmp.ge.s32.totalorder %v39, 0
    %vm41 = vcmp.lt.s32.totalorder %v39, 512
    %vm42 = vmand %vm40, %vm41
    %43 = vst.msk [vmem:[#allocation7] sm:$0xf] %vm42, %v38
    // Predicated region
    $region18: #{tpu_custom_call.1} parent=1 // pred_check
      _
    $region19: #{tpu_custom_call.1} parent=1 // pred_check_branch
      %45 = sbr.rel (0) target = $region21
    $region20: #{tpu_custom_call.1} parent=1 // pred_region
      %s47 = ssub.s32 64, 64
      %48 = vsyncadd [#allocation4], %s47
      %s50 = sshll.u32 [#allocation7], 4
      %s51 = int_to_ptr.vmem [resolvable:$true] %s50
      %53 = dma.vmem_to_hbm [thread:$0]  %s51, 64, %s2, [#allocation4]
    $region21: #{tpu_custom_call.1} parent=1 // pred_fallthru
      _
    // Predicated region
    $region22: #{tpu_custom_call.1} parent=1 // pred_check
      _
    $region23: #{tpu_custom_call.1} parent=1 // pred_check_branch
      %55 = sbr.rel (0) target = $region25
    $region24: #{tpu_custom_call.1} parent=1 // pred_region
      %56 = dma.done [#allocation4], 64
    $region25: #{tpu_custom_call.1} parent=1 // pred_fallthru
      _
    %57 = vsyncpa [#allocation3], 1
    %58 = vsyncpa [#allocation6], 1
    %59 = vsyncpa [#allocation4], 1

</llo_original>
